<compile_context>
chip_gen: v7x
topology: tpu7x:2x2x1
jax: 0.10.0
libtpu: 0.0.40
codegen_flags: <defaults>
</compile_context>

<pallas_src>
import functools

import jax
import jax.numpy as jnp
from jax import lax
from jax.experimental import pallas as pl
from jax.experimental.pallas import tpu as pltpu


# ---------------------------------------------------------------------------
# Tiled linear:  y = x @ w^T (+ b),  w kept in PyTorch (Nout, K) layout.
# ---------------------------------------------------------------------------
_CONTRACT_K = (((1,), (1,)), ((), ()))  # contract K of (tm, tk) x (tn, tk) -> (tm, tn)


def _linear_kernel(x_ref, w_ref, o_ref, acc_ref):
    @pl.when(pl.program_id(2) == 0)
    def _():
        acc_ref[...] = jnp.zeros_like(acc_ref)

    acc_ref[...] += lax.dot_general(
        x_ref[...], w_ref[...], _CONTRACT_K, preferred_element_type=jnp.float32)

    @pl.when(pl.program_id(2) == pl.num_programs(2) - 1)
    def _():
        o_ref[...] = acc_ref[...].astype(o_ref.dtype)


def _linear_bias_kernel(x_ref, w_ref, b_ref, o_ref, acc_ref):
    @pl.when(pl.program_id(2) == 0)
    def _():
        acc_ref[...] = jnp.zeros_like(acc_ref)

    acc_ref[...] += lax.dot_general(
        x_ref[...], w_ref[...], _CONTRACT_K, preferred_element_type=jnp.float32)

    @pl.when(pl.program_id(2) == pl.num_programs(2) - 1)
    def _():
        o_ref[...] = (acc_ref[...] + b_ref[...].astype(jnp.float32)).astype(o_ref.dtype)


def _fit_tile(dim, preferred, align):
    """Largest tile <= preferred that exactly divides dim and respects TPU
    alignment; falls back to the full extent (full-dim blocks are exempt from
    the (8, 128) rule)."""
    if dim <= preferred:
        return dim
    cand = preferred
    while cand >= align:
        if dim % cand == 0 and cand % align == 0:
            return cand
        cand //= 2
    return dim


def linear(x, weight, bias=None, *, tm=512, tn=512, tk=512):
    """x: (M, K); weight: (Nout, K) [PyTorch layout]; bias: (Nout,) or None."""
    M, K = x.shape
    Nout = weight.shape[0]
    tm = _fit_tile(M, tm, 8)      # sublane dim of x / out tiles
    tn = _fit_tile(Nout, tn, 128)  # lane dim of out tile, sublane of w tile
    tk = _fit_tile(K, tk, 128)     # lane dim of x / w tiles
    grid = (M // tm, Nout // tn, K // tk)

    # Double-buffered inputs + output, f32 accumulator; keep the request
    # modest so it also fits v7x's 64 MiB physical VMEM.
    itemsize = jnp.dtype(x.dtype).itemsize
    est = (2 * (tm * tk + tn * tk) * itemsize
           + 2 * tm * tn * itemsize
           + tm * tn * 4 + 2 * tn * 4)
    vmem_limit = int(min(max(est + (8 << 20), 32 << 20), 48 << 20))

    x_spec = pl.BlockSpec((tm, tk), lambda i, j, k: (i, k))
    w_spec = pl.BlockSpec((tn, tk), lambda i, j, k: (j, k))
    o_spec = pl.BlockSpec((tm, tn), lambda i, j, k: (i, j))
    compiler_params = pltpu.CompilerParams(
        dimension_semantics=("parallel", "parallel", "arbitrary"),
        vmem_limit_bytes=vmem_limit)
    scratch = [pltpu.VMEM((tm, tn), jnp.float32)]
    out_shape = jax.ShapeDtypeStruct((M, Nout), x.dtype)

    if bias is None:
        return pl.pallas_call(
            _linear_kernel,
            out_shape=out_shape,
            grid=grid,
            in_specs=[x_spec, w_spec],
            out_specs=o_spec,
            scratch_shapes=scratch,
            compiler_params=compiler_params,
        )(x, weight)

    b2 = bias.reshape(1, Nout)
    b_spec = pl.BlockSpec((1, tn), lambda i, j, k: (0, j))
    return pl.pallas_call(
        _linear_bias_kernel,
        out_shape=out_shape,
        grid=grid,
        in_specs=[x_spec, w_spec, b_spec],
        out_specs=o_spec,
        scratch_shapes=scratch,
        compiler_params=compiler_params,
    )(x, weight, b2)


# ---------------------------------------------------------------------------
# Attention: one batch per grid step; q/k/v sliced per head from the qkv block
# kept in its natural (N, 3C) layout; output written head-merged (N, C).
# ---------------------------------------------------------------------------
def _attn_kernel(qkv_ref, o_ref, *, num_heads, head_dim, scale):
    C = num_heads * head_dim
    heads = []
    for h in range(num_heads):  # H is a small compile-time constant -> unrolled
        q = qkv_ref[0, :, pl.ds(h * head_dim, head_dim)]           # (N, D)
        k = qkv_ref[0, :, pl.ds(C + h * head_dim, head_dim)]       # (N, D)
        v = qkv_ref[0, :, pl.ds(2 * C + h * head_dim, head_dim)]   # (N, D)

        # Fold scale into q (N*D multiplies, not N*N); native-dtype MXU
        # operands with f32 accumulation.
        s = lax.dot_general(q * scale, k, (((1,), (1,)), ((), ())),
                            preferred_element_type=jnp.float32)    # (N, N)
        m = jnp.max(s, axis=-1, keepdims=True)
        p = jnp.exp(s - m)
        l = jnp.sum(p, axis=-1, keepdims=True)
        acc = jnp.dot(p.astype(v.dtype), v, preferred_element_type=jnp.float32)
        o_h = acc * pl.reciprocal(l, approx=True)                  # EUP slot
        heads.append(o_h.astype(o_ref.dtype))

    # Single lane-dense store, heads already merged into (N, C).
    o_ref[0] = jnp.concatenate(heads, axis=-1)


def attention(qkv, num_heads, scale):
    """qkv: (B, N, 3C) in the projection's natural layout -> (B, N, C)."""
    B, N, C3 = qkv.shape
    C = C3 // 3
    D = C // num_heads
    kernel = functools.partial(
        _attn_kernel, num_heads=num_heads, head_dim=D, scale=scale)
    return pl.pallas_call(
        kernel,
        out_shape=jax.ShapeDtypeStruct((B, N, C), qkv.dtype),
        grid=(B,),
        in_specs=[pl.BlockSpec((1, N, C3), lambda b: (b, 0, 0))],
        out_specs=pl.BlockSpec((1, N, C), lambda b: (b, 0, 0)),
        compiler_params=pltpu.CompilerParams(
            dimension_semantics=("parallel",)),
    )(qkv)


# ---------------------------------------------------------------------------
# Full module forward
# ---------------------------------------------------------------------------
def flash_attention_forward(x, params, num_heads):
    B, N, C = x.shape
    D = C // num_heads
    scale = D ** (-0.5)

    # qkv projection (qkv_bias=False -> no bias operand at all)
    x_flat = x.reshape(B * N, C)
    qkv = linear(x_flat, params["qkv_w"])      # (B*N, 3C)
    qkv = qkv.reshape(B, N, 3 * C)             # free reshape; no HBM transpose/splits

    # scaled dot product attention; heads sliced in-kernel, output head-merged
    o = attention(qkv, num_heads, scale)       # (B, N, C)

    # output projection; attn_drop / proj_drop are 0.0 in eval mode
    # TODO(synk): dropout not implemented (p=0.0 / eval mode -> identity)
    out = linear(o.reshape(B * N, C), params["proj_w"], params["proj_b"])
    return out.reshape(B, N, C)


# Pure-JAX reference for sanity checking
def _reference(x, params, num_heads):
    B, N, C = x.shape
    D = C // num_heads
    scale = D ** (-0.5)
    qkv = x @ params["qkv_w"].T
    qkv = qkv.reshape(B, N, 3, num_heads, D).transpose(2, 0, 3, 1, 4)
    q, k, v = qkv[0], qkv[1], qkv[2]
    s = jnp.einsum("bhnd,bhmd->bhnm", q, k) * scale
    p = jax.nn.softmax(s, axis=-1)
    o = jnp.einsum("bhnm,bhmd->bhnd", p, v)
    o = o.transpose(0, 2, 1, 3).reshape(B, N, C)
    return o @ params["proj_w"].T + params["proj_b"]


if __name__ == "__main__":
    # small shapes consistent with the module: B=2, N=8 tokens, C=32 embed, 4 heads
    B, N, C = 2, 8, 32
    num_heads = 4

    key = jax.random.PRNGKey(0)
    kx, kq, kp, kb = jax.random.split(key, 4)
    x = jax.random.normal(kx, (B, N, C), dtype=jnp.float32)

    params = {
        "qkv_w": 0.02 * jax.random.normal(kq, (3 * C, C), dtype=jnp.float32),
        "proj_w": 0.02 * jax.random.normal(kp, (C, C), dtype=jnp.float32),
        "proj_b": 0.02 * jax.random.normal(kb, (C,), dtype=jnp.float32),
    }

    out = flash_attention_forward(x, params, num_heads)
    out = jax.block_until_ready(out)

    ref = _reference(x, params, num_heads)
    assert out.shape == (B, N, C)
    # approx reciprocal (EUP) in the softmax denominator -> slightly relaxed tol
    assert jnp.allclose(out, ref, atol=5e-3, rtol=5e-3), "mismatch vs reference"

    print("KERNEL_OK")
</pallas_src>

<mosaic_0001>
module attributes {stable_mosaic.version = 11 : i64} {
  func.func @_linear_kernel(%arg0: i32, %arg1: i32, %arg2: i32, %arg3: memref<16x32xf32, #tpu.memory_space<vmem>>, %arg4: memref<96x32xf32, #tpu.memory_space<vmem>>, %arg5: memref<16x96xf32, #tpu.memory_space<vmem>>, %arg6: memref<16x96xf32, #tpu.memory_space<vmem>>) attributes {dimension_semantics = [#tpu.dimension_semantics<parallel>, #tpu.dimension_semantics<parallel>, #tpu.dimension_semantics<arbitrary>], iteration_bounds = array<i64: 1, 1, 1>, scalar_prefetch = 0 : i64, scratch_operands = 1 : i64, tpu.core_type = #tpu.core_type<tc>, window_params = [{transform_indices = @transform_0, window_bounds = array<i64: 16, 32>}, {transform_indices = @transform_1, window_bounds = array<i64: 96, 32>}, {transform_indices = @transform_2, window_bounds = array<i64: 16, 96>}]} {
    %c0_i32 = arith.constant 0 : i32
    %0 = arith.cmpi eq, %arg2, %c0_i32 : i32
    %1 = arith.extui %0 : i1 to i32
    %c0_i32_0 = arith.constant 0 : i32
    %2 = arith.cmpi ne, %1, %c0_i32_0 : i32
    scf.if %2 {
      %cst_10 = arith.constant 0.000000e+00 : f32
      %12 = vector.broadcast %cst_10 : f32 to vector<16x96xf32>
      %c0_11 = arith.constant 0 : index
      %c0_12 = arith.constant 0 : index
      %13 = vector.load %arg6[%c0_11, %c0_12] : memref<16x96xf32, #tpu.memory_space<vmem>>, vector<16x96xf32>
      tpu.vector_store %arg6[%c0_11, %c0_12], %12 {strides = array<i32>} : memref<16x96xf32, #tpu.memory_space<vmem>>, vector<16x96xf32>,
    } else {
    }
    %c0 = arith.constant 0 : index
    %c0_1 = arith.constant 0 : index
    %3 = vector.load %arg6[%c0, %c0_1] : memref<16x96xf32, #tpu.memory_space<vmem>>, vector<16x96xf32>
    %c0_2 = arith.constant 0 : index
    %c0_3 = arith.constant 0 : index
    %4 = vector.load %arg3[%c0_2, %c0_3] : memref<16x32xf32, #tpu.memory_space<vmem>>, vector<16x32xf32>
    %c0_4 = arith.constant 0 : index
    %c0_5 = arith.constant 0 : index
    %5 = vector.load %arg4[%c0_4, %c0_5] : memref<96x32xf32, #tpu.memory_space<vmem>>, vector<96x32xf32>
    %cst = arith.constant dense<0.000000e+00> : vector<16x96xf32>
    %6 = tpu.matmul %4, %5, %cst {dimension_numbers = #tpu.dot_dimension_numbers<[1], [1], [0], [0], [0, 0, 1, 0], [], []>} : vector<16x32xf32>, vector<96x32xf32>, vector<16x96xf32> -> vector<16x96xf32>
    %7 = arith.addf %3, %6 : vector<16x96xf32>
    %c0_6 = arith.constant 0 : index
    %c0_7 = arith.constant 0 : index
    %8 = vector.load %arg6[%c0_6, %c0_7] : memref<16x96xf32, #tpu.memory_space<vmem>>, vector<16x96xf32>
    tpu.vector_store %arg6[%c0_6, %c0_7], %7 {strides = array<i32>} : memref<16x96xf32, #tpu.memory_space<vmem>>, vector<16x96xf32>,
    %c0_i32_8 = arith.constant 0 : i32
    %9 = arith.cmpi eq, %arg2, %c0_i32_8 : i32
    %10 = arith.extui %9 : i1 to i32
    %c0_i32_9 = arith.constant 0 : i32
    %11 = arith.cmpi ne, %10, %c0_i32_9 : i32
    scf.if %11 {
      %c0_10 = arith.constant 0 : index
      %c0_11 = arith.constant 0 : index
      %12 = vector.load %arg6[%c0_10, %c0_11] : memref<16x96xf32, #tpu.memory_space<vmem>>, vector<16x96xf32>
      %c0_12 = arith.constant 0 : index
      %c0_13 = arith.constant 0 : index
      %13 = vector.load %arg5[%c0_12, %c0_13] : memref<16x96xf32, #tpu.memory_space<vmem>>, vector<16x96xf32>
      tpu.vector_store %arg5[%c0_12, %c0_13], %12 {strides = array<i32>} : memref<16x96xf32, #tpu.memory_space<vmem>>, vector<16x96xf32>,
    } else {
    }
    return
  }
  func.func @transform_0(%arg0: i32, %arg1: i32, %arg2: i32) -> (i32, i32) {
    %c0_i32 = arith.constant 0 : i32
    return %arg0, %arg2 : i32, i32
  }
  func.func @transform_1(%arg0: i32, %arg1: i32, %arg2: i32) -> (i32, i32) {
    %c0_i32 = arith.constant 0 : i32
    return %arg1, %arg2 : i32, i32
  }
  func.func @transform_2(%arg0: i32, %arg1: i32, %arg2: i32) -> (i32, i32) {
    %c0_i32 = arith.constant 0 : i32
    return %arg0, %arg1 : i32, i32
  }
}

</mosaic_0001>

<llo_original>
// kernel: tpu_custom_call.1
$region0: #{tpu_custom_call.1}
  #allocation0 [shape = 'u32[]', space=smem, size = 0x4, offset = 0x4, fixed_abs, tag = 'smem constant byte address 0x4 - core index']
  #allocation1 [shape = 'u32[144,128]{1,0:T(1,128)}', space=vmem, size = 0x12000, scoped, tag = 'internal scratch']
  #allocation2 [shape = 'f32[16,96]{1,0:T(8,128)}', space=vmem, size = 0x2000, scoped, tag = 'scratch operand']
  %s0 = inlined_call_operand.vmem [shape: f32[16,32], index: 0, kind: input, shape index: {}]
  %s1 = inlined_call_operand.vmem [shape: f32[96,32], index: 1, kind: input, shape index: {}]
  %s2 = inlined_call_operand.hbm [shape: f32[16,96], index: 2, kind: output, shape index: {}]
  %s3 = sld [smem:[#allocation0]]
  $region26: #{tpu_custom_call.1} parent=0
    _
  %s5 = ssub.s32 1, %s3
  %s6 = scalar_select 0, %s5, %s3
  $region1: #{tpu_custom_call.1} parent=0
    #allocation3 [shape = 'u8[8192]{0}', space=vmem, size = 0x2000, scoped, tag = 'output window, operand 0, single buffered']
    #allocation4 [shape = 's32[1]{0}', space=sflag, size = 0x4, scoped, tag = 'scoped memory for tpu_custom_call.1']
    %7 = vsyncpa [#allocation4], 0
    // Predicated region
    $region2: #{tpu_custom_call.1} parent=1 // pred_check
      _
    $region3: #{tpu_custom_call.1} parent=1 // pred_check_branch
      %9 = sbr.rel (0) target = $region5
    $region4: #{tpu_custom_call.1} parent=1 // pred_region
      _
    $region5: #{tpu_custom_call.1} parent=1 // pred_fallthru
      _
    // Predicated region
    $region6: #{tpu_custom_call.1} parent=1 // pred_check
      _
    $region7: #{tpu_custom_call.1} parent=1 // pred_check_branch
      %11 = sbr.rel (0) target = $region9
    $region8: #{tpu_custom_call.1} parent=1 // pred_region
      _
    $region9: #{tpu_custom_call.1} parent=1 // pred_fallthru
      _
    %p12 = scmp.eq.s32.totalorder 0, 0
    // Predicated region
    $region10: #{tpu_custom_call.1} parent=1 // pred_check
      %p13 = pneg %p12
    $region11: #{tpu_custom_call.1} parent=1 // pred_check_branch
      %15 = sbr.rel (%p13) target = $region13
    $region12: #{tpu_custom_call.1} parent=1 // pred_region
      %vm16 = vcmask 785408
      %17 = vst.msk [vmem:[#allocation2] sm:$0xff] %vm16, 0.0
      %18 = vst.msk [vmem:[#allocation2 + $0x8] sm:$0xff] %vm16, 0.0
    $region13: #{tpu_custom_call.1} parent=1 // pred_fallthru
      _
    %v19 = vld [vmem:[#allocation2] sm:$0xff]
    %v20 = vld [vmem:[#allocation2 + $0x8] sm:$0xff]
    %v21 = vld [vmem:[%s0] sm:$0xff]
    %v22 = vld [vmem:[%s0 + $0x8] sm:$0xff]
    %v23 = vld [vmem:[%s1] sm:$0xff]
    %v24 = vld [vmem:[%s1 + $0x8] sm:$0xff]
    %v25 = vld [vmem:[%s1 + $0x10] sm:$0xff]
    %v26 = vld [vmem:[%s1 + $0x18] sm:$0xff]
    %v27 = vld [vmem:[%s1 + $0x20] sm:$0xff]
    %v28 = vld [vmem:[%s1 + $0x28] sm:$0xff]
    %v29 = vld [vmem:[%s1 + $0x30] sm:$0xff]
    %v30 = vld [vmem:[%s1 + $0x38] sm:$0xff]
    %v31 = vld [vmem:[%s1 + $0x40] sm:$0xff]
    %v32 = vld [vmem:[%s1 + $0x48] sm:$0xff]
    %v33 = vld [vmem:[%s1 + $0x50] sm:$0xff]
    %v34 = vld [vmem:[%s1 + $0x58] sm:$0xff]
    %vm35 = vcmask 261120
    %v37 = vsel %vm35, %v21, 0
    %v40 = vsel %vm35, %v22, 0
    %v43 = vsel %vm35, %v23, 0
    %v46 = vsel %vm35, %v24, 0
    %v49 = vsel %vm35, %v25, 0
    %v52 = vsel %vm35, %v26, 0
    %v55 = vsel %vm35, %v27, 0
    %v58 = vsel %vm35, %v28, 0
    %v61 = vsel %vm35, %v29, 0
    %v64 = vsel %vm35, %v30, 0
    %v67 = vsel %vm35, %v31, 0
    %v70 = vsel %vm35, %v32, 0
    %v73 = vsel %vm35, %v33, 0
    %v76 = vsel %vm35, %v34, 0
    %78 = vmatprep.subr.mxu0 0.0
    %79 = vmatpush1.xpose.msra.mxu0 %v43
    %80 = vmatprep.subr.mxu0 0.0
    %81 = vmatpush1.xpose.msra.mxu0 %v46
    %82 = vmatprep.subr.mxu0 0.0
    %83 = vmatpush1.xpose.msra.mxu0 %v49
    %84 = vmatprep.subr.mxu0 0.0
    %85 = vmatpush1.xpose.msra.mxu0 %v52
    %86 = vmatprep.subr.mxu0 0.0
    %87 = vmatpush1.xpose.msra.mxu0 %v55
    %88 = vmatprep.subr.mxu0 0.0
    %89 = vmatpush1.xpose.msra.mxu0 %v58
    %90 = vmatprep.subr.mxu0 0.0
    %91 = vmatpush1.xpose.msra.mxu0 %v61
    %92 = vmatprep.subr.mxu0 0.0
    %93 = vmatpush1.xpose.msra.mxu0 %v64
    %94 = vmatprep.subr.mxu0 0.0
    %95 = vmatpush1.xpose.msra.mxu0 %v67
    %96 = vmatprep.subr.mxu0 0.0
    %97 = vmatpush1.xpose.msra.mxu0 %v70
    %98 = vmatprep.subr.mxu0 0.0
    %99 = vmatpush1.xpose.msra.mxu0 %v73
    %100 = vmatprep.subr.mxu0 0.0
    %101 = vmatpush1.xpose.msra.mxu0 %v76
    %102 = vmatprep.subr.mxu0 0.0
    %103 = vmatpush1.xpose.msra.mxu0 0.0
    %104 = vmatprep.subr.mxu0 0.0
    %105 = vmatpush1.xpose.msra.mxu0 0.0
    %106 = vmatprep.subr.mxu0 0.0
    %107 = vmatpush1.xpose.msra.mxu0 0.0
    %108 = vmatprep.subr.mxu0 0.0
    %109 = vmatpush1.xpose.msra.mxu0 0.0
    %110 = vmatprep.subr.mxu0 0.0
    %111 = vmatpush1.xpose.msra.mxu0 0.0
    %112 = vmatprep.subr.mxu0 0.0
    %113 = vmatpush1.xpose.msra.mxu0 0.0
    %114 = vmatprep.subr.mxu0 0.0
    %115 = vmatpush1.xpose.msra.mxu0 0.0
    %116 = vmatprep.subr.mxu0 0.0
    %117 = vmatpush1.xpose.msra.mxu0 0.0
    %118 = vmatprep.subr.mxu0 0.0
    %119 = vmatpush1.xpose.msra.mxu0 0.0
    %120 = vmatprep.subr.mxu0 0.0
    %121 = vmatpush1.xpose.msra.mxu0 0.0
    %122 = vmatprep.subr.mxu0 0.0
    %123 = vmatpush1.xpose.msra.mxu0 0.0
    %124 = vmatprep.subr.mxu0 0.0
    %125 = vmatpush1.xpose.msra.mxu0 0.0
    %126 = vmatprep.subr.mxu0 0.0
    %127 = vmatpush1.xpose.msra.mxu0 0.0
    %128 = vmatprep.subr.mxu0 0.0
    %129 = vmatpush1.xpose.msra.mxu0 0.0
    %130 = vmatprep.subr.mxu0 0.0
    %131 = vmatpush1.xpose.msra.mxu0 0.0
    %132 = vmatprep.subr.mxu0 0.0
    %133 = vmatpush1.xpose.msra.mxu0 0.0
    %134 = vmatprep.subr.mxu0 0.0
    %135 = vmatpush1.xpose.msra.mxu0 0.0
    %136 = vmatprep.subr.mxu0 0.0
    %137 = vmatpush1.xpose.msra.mxu0 0.0
    %138 = vmatprep.subr.mxu0 0.0
    %139 = vmatpush1.xpose.msra.mxu0 0.0
    %140 = vmatprep.subr.mxu0 0.0
    %141 = vmatpush1.xpose.msra.mxu0 0.0
    %142 = vmatprep.mubr.f32.mxu0 0.0
    %143 = vmatmul.mubr.f32.gmra.mrb[0].mxu0 %v37
    %v144 = vpop.f32.mrb[0].mxu0
    %v145 = vadd.f32 0.0, %v144
    %v146 = vpop.f32.mrb[0].mxu0
    %147 = vmatprep.mubr.f32.mxu0 0.0
    %148 = vmatmul.mubr.f32.gmra.mrb[0].mxu0 %v40
    %v149 = vpop.f32.mrb[0].mxu0
    %v150 = vadd.f32 0.0, %v149
    %v151 = vpop.f32.mrb[0].mxu0
    %152 = vdwg.mxu0
    %v153 = vadd.f32 %v19, %v145
    %v154 = vadd.f32 %v20, %v150
    %vm155 = vcmask 785408
    %156 = vst.msk [vmem:[#allocation2] sm:$0xff] %vm155, %v153
    %157 = vst.msk [vmem:[#allocation2 + $0x8] sm:$0xff] %vm155, %v154
    // Predicated region
    $region14: #{tpu_custom_call.1} parent=1 // pred_check
      %p158 = pneg %p12
    $region15: #{tpu_custom_call.1} parent=1 // pred_check_branch
      %160 = sbr.rel (%p158) target = $region17
    $region16: #{tpu_custom_call.1} parent=1 // pred_region
      %v161 = vld [vmem:[#allocation2] sm:$0xff]
      %v162 = vld [vmem:[#allocation2 + $0x8] sm:$0xff]
      %163 = vst.msk [vmem:[#allocation3] sm:$0xff] %vm155, %v161
      %164 = vst.msk [vmem:[#allocation3 + $0x8] sm:$0xff] %vm155, %v162
    $region17: #{tpu_custom_call.1} parent=1 // pred_fallthru
      _
    // Predicated region
    $region18: #{tpu_custom_call.1} parent=1 // pred_check
      _
    $region19: #{tpu_custom_call.1} parent=1 // pred_check_branch
      %166 = sbr.rel (0) target = $region21
    $region20: #{tpu_custom_call.1} parent=1 // pred_region
      %s168 = ssub.s32 256, 256
      %169 = vsyncadd [#allocation4], %s168
      %s170 = sshll.u32 [#allocation3], 4
      %s171 = int_to_ptr.vmem [resolvable:$true] %s170
      %176 = dma.vmem_to_hbm [thread:$0]  %s171, 256, %s2, [#allocation4], 128, 128, 8
    $region21: #{tpu_custom_call.1} parent=1 // pred_fallthru
      _
    // Predicated region
    $region22: #{tpu_custom_call.1} parent=1 // pred_check
      _
    $region23: #{tpu_custom_call.1} parent=1 // pred_check_branch
      %178 = sbr.rel (0) target = $region25
    $region24: #{tpu_custom_call.1} parent=1 // pred_region
      %179 = dma.done [#allocation4], 256
    $region25: #{tpu_custom_call.1} parent=1 // pred_fallthru
      _
    %180 = vsyncpa [#allocation4], 1

</llo_original>
